<compile_context>
chip_gen: v6e
topology: v6e:2x2x1
jax: 0.10.0
libtpu: 0.0.40
codegen_flags: <defaults>
</compile_context>

<pallas_src>
import functools

import jax
import jax.numpy as jnp
from jax.experimental import pallas as pl
from jax.experimental.pallas import tpu as pltpu

IN_DIM = 10
HIDDEN = 50
OUT_DIM = 2


def _round_up(a: int, m: int) -> int:
    return (a + m - 1) // m * m


def mlp_kernel(x_ref, w1_ref, b1_ref, w2_ref, b2_ref, o_ref):
    # x: (TB, 10), w1: (10, 50), b1: (1, 50), w2: (50, 2), b2: (1, 2), o: (TB, 2)
    # Narrow K / N dims are handled logically by Mosaic (lane-masked); the MXU
    # has huge slack here so the padded physical matmul shape is irrelevant.
    h = jnp.dot(x_ref[...], w1_ref[...], preferred_element_type=jnp.float32)
    h = jnp.maximum(h + b1_ref[...], 0.0)                       # ReLU
    y = jnp.dot(h, w2_ref[...], preferred_element_type=jnp.float32) + b2_ref[...]
    o_ref[...] = y.astype(o_ref.dtype)


def prepare_params(w1, b1, w2, b2):
    """One-time preprocessing of PyTorch-layout params: transpose weights to
    (in, out) and reshape biases to (1, out). No padding — done at init, not per call."""
    w1_t = jnp.asarray(w1, jnp.float32).T                    # (10, 50)
    b1_r = jnp.asarray(b1, jnp.float32).reshape(1, HIDDEN)   # (1, 50)
    w2_t = jnp.asarray(w2, jnp.float32).T                    # (50, 2)
    b2_r = jnp.asarray(b2, jnp.float32).reshape(1, OUT_DIM)  # (1, 2)
    return w1_t, b1_r, w2_t, b2_r


@functools.partial(jax.jit, static_argnames=("tb",))
def simple_model_forward(x, w1_t, b1_r, w2_t, b2_r, *, tb: int = 8192):
    """x: (B, 10) float32; params from prepare_params. Returns (B, 2) float32."""
    B = x.shape[0]

    # Batch tile: multiple of 8, capped at `tb` (VMEM budget ~ tb * 2.5 KiB with
    # double buffering + the lane-padded hidden intermediate), and capped at
    # round_up(cdiv(B, 2), 8) so the grid has >= 2 steps whenever B allows —
    # keeps both v7x TensorCores busy. Ragged last block is clipped by Pallas.
    tb_eff = max(8, min(tb, _round_up(pl.cdiv(B, 2), 8)))
    grid = pl.cdiv(B, tb_eff)

    return pl.pallas_call(
        mlp_kernel,
        out_shape=jax.ShapeDtypeStruct((B, OUT_DIM), x.dtype),
        grid_spec=pltpu.PrefetchScalarGridSpec(
            num_scalar_prefetch=0,
            grid=(grid,),
            in_specs=[
                # x: tiled over batch, narrow (tb, 10) HBM blocks -> pipelined DMA.
                # Last dim == full array dim, so the (8,128) rule is satisfied.
                pl.BlockSpec((tb_eff, IN_DIM), lambda i: (i, 0)),
                # Weights / biases: same block every step -> stay VMEM-resident.
                pl.BlockSpec((IN_DIM, HIDDEN), lambda i: (0, 0)),
                pl.BlockSpec((1, HIDDEN), lambda i: (0, 0)),
                pl.BlockSpec((HIDDEN, OUT_DIM), lambda i: (0, 0)),
                pl.BlockSpec((1, OUT_DIM), lambda i: (0, 0)),
            ],
            # Output written directly at real width (tb, 2): masked partial-lane
            # stores in-kernel, but 64x fewer HBM write bytes and no wrapper slice.
            out_specs=pl.BlockSpec((tb_eff, OUT_DIM), lambda i: (i, 0)),
        ),
        compiler_params=pltpu.CompilerParams(
            # Batch rows are independent: parallel axis (2x on v7x's dual TC).
            dimension_semantics=("parallel",),
            # Headroom for large batch tiles: > v5e's 16 MiB / v6e-v7x's 32 MiB
            # default scoped VMEM, < v7x's 64 MiB physical VMEM.
            vmem_limit_bytes=48 * 1024 * 1024,
        ),
    )(x, w1_t, b1_r, w2_t, b2_r)


def _torch_linear_init(key, fan_in, shape):
    # Mimic nn.Linear default init: U(-1/sqrt(fan_in), 1/sqrt(fan_in)). Deterministic.
    bound = 1.0 / jnp.sqrt(fan_in)
    return jax.random.uniform(key, shape, jnp.float32, -bound, bound)


if __name__ == "__main__":
    key = jax.random.PRNGKey(0)
    k_x, k_w1, k_b1, k_w2, k_b2 = jax.random.split(key, 5)

    # Parameters in PyTorch layout: weight (out, in), bias (out,)
    w1 = _torch_linear_init(k_w1, IN_DIM, (HIDDEN, IN_DIM))
    b1 = _torch_linear_init(k_b1, IN_DIM, (HIDDEN,))
    w2 = _torch_linear_init(k_w2, HIDDEN, (OUT_DIM, HIDDEN))
    b2 = _torch_linear_init(k_b2, HIDDEN, (OUT_DIM,))

    # One-time parameter preprocessing (hoisted out of the per-call path).
    params = prepare_params(w1, b1, w2, b2)

    def reference(x):
        return jnp.maximum(x @ w1.T + b1, 0.0) @ w2.T + b2

    # Case 1: small batch (B=16) — grid=(2,) with tb=8, exercises the pipeline.
    x_small = jax.random.normal(k_x, (16, IN_DIM), jnp.float32)
    out_small = simple_model_forward(x_small, *params)
    jax.block_until_ready(out_small)
    assert out_small.shape == (16, OUT_DIM)
    assert jnp.allclose(out_small, reference(x_small), atol=1e-5, rtol=1e-5)

    # Case 2: larger batch with a ragged last tile (B=1000 -> tb=504, grid=(2,),
    # last block has 496 valid rows; clipped rows are never written back).
    x_big = jax.random.normal(jax.random.PRNGKey(1), (1000, IN_DIM), jnp.float32)
    out_big = simple_model_forward(x_big, *params)
    jax.block_until_ready(out_big)
    assert out_big.shape == (1000, OUT_DIM)
    assert jnp.allclose(out_big, reference(x_big), atol=1e-5, rtol=1e-5)

    print("KERNEL_OK")
</pallas_src>

<mosaic_0001>
module attributes {stable_mosaic.version = 11 : i64} {
  func.func @mlp_kernel(%arg0: i32, %arg1: memref<8x10xf32, #tpu.memory_space<vmem>>, %arg2: memref<10x50xf32, #tpu.memory_space<vmem>>, %arg3: memref<1x50xf32, #tpu.memory_space<vmem>>, %arg4: memref<50x2xf32, #tpu.memory_space<vmem>>, %arg5: memref<1x2xf32, #tpu.memory_space<vmem>>, %arg6: memref<8x2xf32, #tpu.memory_space<vmem>>) attributes {dimension_semantics = [#tpu.dimension_semantics<parallel>], iteration_bounds = array<i64: 2>, scalar_prefetch = 0 : i64, scratch_operands = 0 : i64, tpu.core_type = #tpu.core_type<tc>, window_params = [{transform_indices = @transform_0, window_bounds = array<i64: 8, 10>}, {pipeline_mode = #tpu.pipeline_mode<synchronous>, transform_indices = @transform_1, window_bounds = array<i64: 10, 50>}, {pipeline_mode = #tpu.pipeline_mode<synchronous>, transform_indices = @transform_2, window_bounds = array<i64: 1, 50>}, {pipeline_mode = #tpu.pipeline_mode<synchronous>, transform_indices = @transform_3, window_bounds = array<i64: 50, 2>}, {pipeline_mode = #tpu.pipeline_mode<synchronous>, transform_indices = @transform_4, window_bounds = array<i64: 1, 2>}, {transform_indices = @transform_5, window_bounds = array<i64: 8, 2>}]} {
    %c0 = arith.constant 0 : index
    %c0_0 = arith.constant 0 : index
    %0 = vector.load %arg1[%c0, %c0_0] : memref<8x10xf32, #tpu.memory_space<vmem>>, vector<8x10xf32>
    %c0_1 = arith.constant 0 : index
    %c0_2 = arith.constant 0 : index
    %1 = vector.load %arg2[%c0_1, %c0_2] : memref<10x50xf32, #tpu.memory_space<vmem>>, vector<10x50xf32>
    %cst = arith.constant dense<0.000000e+00> : vector<8x50xf32>
    %2 = tpu.matmul %0, %1, %cst {dimension_numbers = #tpu.dot_dimension_numbers<[1], [0], [0], [1], [0, 0, 1, 1], [], []>} : vector<8x10xf32>, vector<10x50xf32>, vector<8x50xf32> -> vector<8x50xf32>
    %c0_3 = arith.constant 0 : index
    %c0_4 = arith.constant 0 : index
    %3 = vector.load %arg3[%c0_3, %c0_4] : memref<1x50xf32, #tpu.memory_space<vmem>>, vector<1x50xf32>
    %4 = vector.broadcast %3 : vector<1x50xf32> to vector<8x50xf32>
    %5 = arith.addf %2, %4 : vector<8x50xf32>
    %cst_5 = arith.constant 0.000000e+00 : f32
    %6 = vector.broadcast %cst_5 : f32 to vector<8x50xf32>
    %7 = arith.maximumf %5, %6 : vector<8x50xf32>
    %c0_6 = arith.constant 0 : index
    %c0_7 = arith.constant 0 : index
    %8 = vector.load %arg4[%c0_6, %c0_7] : memref<50x2xf32, #tpu.memory_space<vmem>>, vector<50x2xf32>
    %cst_8 = arith.constant dense<0.000000e+00> : vector<8x2xf32>
    %9 = tpu.matmul %7, %8, %cst_8 {dimension_numbers = #tpu.dot_dimension_numbers<[1], [0], [0], [1], [0, 0, 1, 1], [], []>} : vector<8x50xf32>, vector<50x2xf32>, vector<8x2xf32> -> vector<8x2xf32>
    %c0_9 = arith.constant 0 : index
    %c0_10 = arith.constant 0 : index
    %10 = vector.load %arg5[%c0_9, %c0_10] : memref<1x2xf32, #tpu.memory_space<vmem>>, vector<1x2xf32>
    %11 = vector.broadcast %10 : vector<1x2xf32> to vector<8x2xf32>
    %12 = arith.addf %9, %11 : vector<8x2xf32>
    %c0_11 = arith.constant 0 : index
    %c0_12 = arith.constant 0 : index
    %13 = vector.load %arg6[%c0_11, %c0_12] : memref<8x2xf32, #tpu.memory_space<vmem>>, vector<8x2xf32>
    tpu.vector_store %arg6[%c0_11, %c0_12], %12 {strides = array<i32>} : memref<8x2xf32, #tpu.memory_space<vmem>>, vector<8x2xf32>,
    return
  }
  func.func @transform_0(%arg0: i32) -> (i32, i32) {
    %c0_i32 = arith.constant 0 : i32
    %c0_i32_0 = arith.constant 0 : i32
    return %arg0, %c0_i32 : i32, i32
  }
  func.func @transform_1(%arg0: i32) -> (i32, i32) {
    %c0_i32 = arith.constant 0 : i32
    %c0_i32_0 = arith.constant 0 : i32
    %c0_i32_1 = arith.constant 0 : i32
    return %c0_i32, %c0_i32_0 : i32, i32
  }
  func.func @transform_2(%arg0: i32) -> (i32, i32) {
    %c0_i32 = arith.constant 0 : i32
    %c0_i32_0 = arith.constant 0 : i32
    %c0_i32_1 = arith.constant 0 : i32
    return %c0_i32, %c0_i32_0 : i32, i32
  }
  func.func @transform_3(%arg0: i32) -> (i32, i32) {
    %c0_i32 = arith.constant 0 : i32
    %c0_i32_0 = arith.constant 0 : i32
    %c0_i32_1 = arith.constant 0 : i32
    return %c0_i32, %c0_i32_0 : i32, i32
  }
  func.func @transform_4(%arg0: i32) -> (i32, i32) {
    %c0_i32 = arith.constant 0 : i32
    %c0_i32_0 = arith.constant 0 : i32
    %c0_i32_1 = arith.constant 0 : i32
    return %c0_i32, %c0_i32_0 : i32, i32
  }
  func.func @transform_5(%arg0: i32) -> (i32, i32) {
    %c0_i32 = arith.constant 0 : i32
    %c0_i32_0 = arith.constant 0 : i32
    return %arg0, %c0_i32 : i32, i32
  }
}

</mosaic_0001>

<llo_original>
// kernel: simple_model_forward.1
$region0: #{simple_model_forward.1}
  #allocation0 [shape = 'u32[]', space=smem, size = 0x4, offset = 0x4, fixed_abs, tag = 'smem constant byte address 0x4 - core index']
  #allocation1 [shape = 'u32[144,128]{1,0:T(1,128)}', space=vmem, size = 0x12000, scoped, tag = 'internal scratch']
  %s0 = inlined_call_operand.vmem [shape: f32[16,10], index: 0, kind: input, shape index: {}]
  %s1 = inlined_call_operand.vmem [shape: f32[10,50], index: 1, kind: input, shape index: {}]
  %s2 = inlined_call_operand.vmem [shape: f32[1,50], index: 2, kind: input, shape index: {}]
  %s3 = inlined_call_operand.vmem [shape: f32[50,2], index: 3, kind: input, shape index: {}]
  %s4 = inlined_call_operand.vmem [shape: f32[1,2], index: 4, kind: input, shape index: {}]
  %s5 = inlined_call_operand.vmem [shape: f32[16,2], index: 5, kind: output, shape index: {}]
  %s6 = sld [smem:[#allocation0]]
  $region53: #{simple_model_forward.1} parent=0
    _
  %s8 = ssub.s32 1, %s6
  %s9 = scalar_select 0, %s8, %s6
  loop: start=0, step=1, limit=4
  $region2: #{simple_model_forward.1} parent=0 // loop_pre_header
    _
  $region3: #{simple_model_forward.1} parent=0 // loop_header
    %s11 = sphi 0, %s15
    %p12 = scmp.ge.s32.totalorder %s11, 4
    %s21 = sphi 0, %s23
    %s24 = sphi 0, %s21
    %s25 = sphi 0, %s24
    %s41 = sphi 0, %s25
    %s45 = sphi 0, %s45
    %s47 = sphi 0, %s45
    %s48 = sphi 0, %s47
    %s62 = sphi 0, %s48
    %s66 = sphi 0, %s66
    %s68 = sphi 0, %s66
    %s69 = sphi 0, %s68
    %s83 = sphi 0, %s69
    %s87 = sphi 0, %s87
    %s89 = sphi 0, %s87
    %s90 = sphi 0, %s89
    %s104 = sphi 0, %s90
    %s108 = sphi 0, %s108
    %s110 = sphi 0, %s108
    %s111 = sphi 0, %s110
    %s125 = sphi 0, %s111
    %s131 = sphi 0, %s133
    %s134 = sphi 0, %s131
    %s135 = sphi 0, %s134
    %s151 = sphi 0, %s135
  $region4: #{simple_model_forward.1} parent=0 // loop_header_branch
    %14 = sbr.rel (%p12) target = $region8
  $region5: #{simple_model_forward.1} parent=0 // loop_body
    %s16 = ssub.s32 %s11, 1
    %s17 = ssub.s32 %s11, 2
    %s18 = sadd.s32 %s11, 1
    %s19 = ssub.s32 %s11, %s18
    %p20 = scmp.eq.s32.totalorder %s19, 0
    %s22 = sadd.s32 %s21, 1
    %s23 = scalar_select %p20, %s21, %s22
    %p26 = pneg %p20
    %p27 = scmp.eq.s32.totalorder %s11, 1
    %p28 = por %p26, %p27
    %p29 = scmp.ne.s32.totalorder %s21, %s24
    %p30 = scmp.eq.s32.totalorder %s11, 0
    %p31 = por %p29, %p30
    %p32 = scmp.ne.s32.totalorder %s21, %s24
    %p33 = scmp.eq.s32.totalorder %s16, 1
    %p34 = por %p32, %p33
    %p35 = scmp.ne.s32.totalorder %s24, %s25
    %p36 = scmp.eq.s32.totalorder %s16, 0
    %p37 = por %p35, %p36
    %p38 = scmp.ne.s32.totalorder %s24, %s25
    %p39 = scmp.eq.s32.totalorder %s17, 1
    %p40 = por %p38, %p39
    %p42 = scmp.ne.s32.totalorder %s25, %s41
    %p43 = scmp.eq.s32.totalorder %s17, 0
    %p44 = por %p42, %p43
    %s46 = sadd.s32 %s45, 1
    %p49 = scmp.eq.s32.totalorder %s11, 1
    %p50 = scmp.ne.s32.totalorder %s45, %s47
    %p51 = scmp.eq.s32.totalorder %s11, 0
    %p52 = por %p50, %p51
    %p53 = scmp.ne.s32.totalorder %s45, %s47
    %p54 = scmp.eq.s32.totalorder %s16, 1
    %p55 = por %p53, %p54
    %p56 = scmp.ne.s32.totalorder %s47, %s48
    %p57 = scmp.eq.s32.totalorder %s16, 0
    %p58 = por %p56, %p57
    %p59 = scmp.ne.s32.totalorder %s47, %s48
    %p60 = scmp.eq.s32.totalorder %s17, 1
    %p61 = por %p59, %p60
    %p63 = scmp.ne.s32.totalorder %s48, %s62
    %p64 = scmp.eq.s32.totalorder %s17, 0
    %p65 = por %p63, %p64
    %s67 = sadd.s32 %s66, 1
    %p70 = scmp.eq.s32.totalorder %s11, 1
    %p71 = scmp.ne.s32.totalorder %s66, %s68
    %p72 = scmp.eq.s32.totalorder %s11, 0
    %p73 = por %p71, %p72
    %p74 = scmp.ne.s32.totalorder %s66, %s68
    %p75 = scmp.eq.s32.totalorder %s16, 1
    %p76 = por %p74, %p75
    %p77 = scmp.ne.s32.totalorder %s68, %s69
    %p78 = scmp.eq.s32.totalorder %s16, 0
    %p79 = por %p77, %p78
    %p80 = scmp.ne.s32.totalorder %s68, %s69
    %p81 = scmp.eq.s32.totalorder %s17, 1
    %p82 = por %p80, %p81
    %p84 = scmp.ne.s32.totalorder %s69, %s83
    %p85 = scmp.eq.s32.totalorder %s17, 0
    %p86 = por %p84, %p85
    %s88 = sadd.s32 %s87, 1
    %p91 = scmp.eq.s32.totalorder %s11, 1
    %p92 = scmp.ne.s32.totalorder %s87, %s89
    %p93 = scmp.eq.s32.totalorder %s11, 0
    %p94 = por %p92, %p93
    %p95 = scmp.ne.s32.totalorder %s87, %s89
    %p96 = scmp.eq.s32.totalorder %s16, 1
    %p97 = por %p95, %p96
    %p98 = scmp.ne.s32.totalorder %s89, %s90
    %p99 = scmp.eq.s32.totalorder %s16, 0
    %p100 = por %p98, %p99
    %p101 = scmp.ne.s32.totalorder %s89, %s90
    %p102 = scmp.eq.s32.totalorder %s17, 1
    %p103 = por %p101, %p102
    %p105 = scmp.ne.s32.totalorder %s90, %s104
    %p106 = scmp.eq.s32.totalorder %s17, 0
    %p107 = por %p105, %p106
    %s109 = sadd.s32 %s108, 1
    %p112 = scmp.eq.s32.totalorder %s11, 1
    %p113 = scmp.ne.s32.totalorder %s108, %s110
    %p114 = scmp.eq.s32.totalorder %s11, 0
    %p115 = por %p113, %p114
    %p116 = scmp.ne.s32.totalorder %s108, %s110
    %p117 = scmp.eq.s32.totalorder %s16, 1
    %p118 = por %p116, %p117
    %p119 = scmp.ne.s32.totalorder %s110, %s111
    %p120 = scmp.eq.s32.totalorder %s16, 0
    %p121 = por %p119, %p120
    %p122 = scmp.ne.s32.totalorder %s110, %s111
    %p123 = scmp.eq.s32.totalorder %s17, 1
    %p124 = por %p122, %p123
    %p126 = scmp.ne.s32.totalorder %s111, %s125
    %p127 = scmp.eq.s32.totalorder %s17, 0
    %p128 = por %p126, %p127
    %s129 = ssub.s32 %s11, %s18
    %p130 = scmp.eq.s32.totalorder %s129, 0
    %s132 = sadd.s32 %s131, 1
    %s133 = scalar_select %p130, %s131, %s132
    %p136 = pneg %p130
    %p137 = scmp.eq.s32.totalorder %s11, 1
    %p138 = por %p136, %p137
    %p139 = scmp.ne.s32.totalorder %s131, %s134
    %p140 = scmp.eq.s32.totalorder %s11, 0
    %p141 = por %p139, %p140
    %p142 = scmp.ne.s32.totalorder %s131, %s134
    %p143 = scmp.eq.s32.totalorder %s16, 1
    %p144 = por %p142, %p143
    %p145 = scmp.ne.s32.totalorder %s134, %s135
    %p146 = scmp.eq.s32.totalorder %s16, 0
    %p147 = por %p145, %p146
    %p148 = scmp.ne.s32.totalorder %s134, %s135
    %p149 = scmp.eq.s32.totalorder %s17, 1
    %p150 = por %p148, %p149
    %p152 = scmp.ne.s32.totalorder %s135, %s151
    %p153 = scmp.eq.s32.totalorder %s17, 0
    %p154 = por %p152, %p153
    %p155 = scmp.le.s32.totalorder 1, %s11
    %p156 = scmp.lt.s32.totalorder %s11, 3
    %p157 = pnand %p155, %p156
    %p158 = pneg %p157
    // Predicated region
    $region9: #{simple_model_forward.1} parent=5 // pred_check
      _
    $region10: #{simple_model_forward.1} parent=5 // pred_check_branch
      %160 = sbr.rel (%p157) target = $region12
    $region11: #{simple_model_forward.1} parent=5 // pred_region
      %s161 = ssub.s32 %s11, 1
      // Predicated region
      $region13: #{simple_model_forward.1} parent=11 // pred_check
        %p162 = pneg %p58
      $region14: #{simple_model_forward.1} parent=11 // pred_check_branch
        %164 = sbr.rel (%p162) target = $region16
      $region15: #{simple_model_forward.1} parent=11 // pred_region
        _
      $region16: #{simple_model_forward.1} parent=11 // pred_fallthru
        _
      // Predicated region
      $region17: #{simple_model_forward.1} parent=11 // pred_check
        %p165 = pneg %p79
      $region18: #{simple_model_forward.1} parent=11 // pred_check_branch
        %167 = sbr.rel (%p165) target = $region20
      $region19: #{simple_model_forward.1} parent=11 // pred_region
        _
      $region20: #{simple_model_forward.1} parent=11 // pred_fallthru
        _
      // Predicated region
      $region21: #{simple_model_forward.1} parent=11 // pred_check
        %p168 = pneg %p100
      $region22: #{simple_model_forward.1} parent=11 // pred_check_branch
        %170 = sbr.rel (%p168) target = $region24
      $region23: #{simple_model_forward.1} parent=11 // pred_region
        _
      $region24: #{simple_model_forward.1} parent=11 // pred_fallthru
        _
      // Predicated region
      $region25: #{simple_model_forward.1} parent=11 // pred_check
        %p171 = pneg %p121
      $region26: #{simple_model_forward.1} parent=11 // pred_check_branch
        %173 = sbr.rel (%p171) target = $region28
      $region27: #{simple_model_forward.1} parent=11 // pred_region
        _
      $region28: #{simple_model_forward.1} parent=11 // pred_fallthru
        _
    $region12: #{simple_model_forward.1} parent=5 // pred_fallthru
      _
    %p174 = scmp.lt.s32.totalorder %s11, 2
    // Predicated region
    $region29: #{simple_model_forward.1} parent=5 // pred_check
      %p175 = pneg %p174
    $region30: #{simple_model_forward.1} parent=5 // pred_check_branch
      %177 = sbr.rel (%p175) target = $region32
    $region31: #{simple_model_forward.1} parent=5 // pred_region
      // Predicated region
      $region33: #{simple_model_forward.1} parent=31 // pred_check
        %p178 = pneg %p31
      $region34: #{simple_model_forward.1} parent=31 // pred_check_branch
        %180 = sbr.rel (%p178) target = $region36
      $region35: #{simple_model_forward.1} parent=31 // pred_region
        %p181 = scmp.lt.s32.totalorder %s11, 1
        %s182 = scalar_select %p181, %s11, 1
        %s183 = smul.addr %s182, 8
        %s184 = scalar_lea.vmem %s0, %s183
      $region36: #{simple_model_forward.1} parent=31 // pred_fallthru
        _
    $region32: #{simple_model_forward.1} parent=5 // pred_fallthru
      _
    %p185 = scmp.le.s32.totalorder 1, %s11
    %p186 = scmp.lt.s32.totalorder %s11, 3
    %p187 = pnand %p185, %p186
    %p188 = pneg %p187
    // Predicated region
    $region37: #{simple_model_forward.1} parent=5 // pred_check
      _
    $region38: #{simple_model_forward.1} parent=5 // pred_check_branch
      %190 = sbr.rel (%p187) target = $region40
    $region39: #{simple_model_forward.1} parent=5 // pred_region
      %s191 = ssub.s32 %s11, 1
      %p192 = scmp.lt.s32.totalorder %s16, 1
      %s193 = scalar_select %p192, %s16, 1
      %s194 = smul.addr %s193, 8
      %s195 = scalar_lea.vmem %s0, %s194
      %p196 = pneg %p37
      %p197 = pneg %p34
      %p198 = pneg %p58
      %p199 = pneg %p55
      %p200 = pneg %p79
      %p201 = pneg %p76
      %p202 = pneg %p100
      %p203 = pneg %p97
      %p204 = pneg %p121
      %p205 = pneg %p118
      %p206 = pneg %p147
      %p207 = pneg %p144
      %p208 = scmp.lt.s32.totalorder %s16, 1
      %s209 = scalar_select %p208, %s16, 1
      %s210 = smul.addr %s209, 8
      %s211 = scalar_lea.vmem %s5, %s210
      %p212 = scmp.lt.s32.totalorder %s16, 1
      %s213 = scalar_select %p212, %s16, 1
      %s214 = smul.addr %s213, 8
      %s215 = scalar_lea.vmem %s0, %s214
      %p216 = scmp.lt.s32.totalorder %s16, 1
      %s217 = scalar_select %p216, %s16, 1
      %s218 = smul.addr %s217, 8
      %s219 = scalar_lea.vmem %s5, %s218
      %v220 = vld [vmem:[%s215] sm:$0xff]
      %v221 = vld [vmem:[%s1] sm:$0xff]
      %v222 = vld [vmem:[%s1 + $0x8] sm:$0x3]
      %v223 = vld [vmem:[%s2] sm:$0x1]
      %v225 = vlaneseq
      %v226 = vshrl.u32 %v225, 7
      %v227 = vsub.s32 0, %v226
      %v228 = vrot.slane %v223, %v227
      %vm230 = vcmask 80896
      %v232 = vsel %vm230, %v220, 0
      %vm234 = vcmask 1041408
      %v236 = vsel %vm234, %v222, 0
      %238 = vmatprep.subr.mxu0 0.0
      %239 = vmatpush1.msra.mxu0 0.0
      %240 = vmatprep.subr.mxu0 0.0
      %241 = vmatpush1.msra.mxu0 0.0
      %242 = vmatprep.subr.mxu0 0.0
      %243 = vmatpush1.msra.mxu0 0.0
      %244 = vmatprep.subr.mxu0 0.0
      %245 = vmatpush1.msra.mxu0 0.0
      %246 = vmatprep.subr.mxu0 0.0
      %247 = vmatpush1.msra.mxu0 0.0
      %248 = vmatprep.subr.mxu0 0.0
      %249 = vmatpush1.msra.mxu0 0.0
      %250 = vmatprep.subr.mxu0 0.0
      %251 = vmatpush1.msra.mxu0 0.0
      %252 = vmatprep.subr.mxu0 0.0
      %253 = vmatpush1.msra.mxu0 0.0
      %254 = vmatprep.subr.mxu0 0.0
      %255 = vmatpush1.msra.mxu0 0.0
      %256 = vmatprep.subr.mxu0 0.0
      %257 = vmatpush1.msra.mxu0 0.0
      %258 = vmatprep.subr.mxu0 0.0
      %259 = vmatpush1.msra.mxu0 0.0
      %260 = vmatprep.subr.mxu0 0.0
      %261 = vmatpush1.msra.mxu0 0.0
      %262 = vmatprep.subr.mxu0 0.0
      %263 = vmatpush1.msra.mxu0 0.0
      %264 = vmatprep.subr.mxu0 0.0
      %265 = vmatpush1.msra.mxu0 0.0
      %266 = vmatprep.subr.mxu0 0.0
      %267 = vmatpush1.msra.mxu0 %v236
      %268 = vmatprep.subr.mxu0 0.0
      %269 = vmatpush1.msra.mxu0 %v221
      %270 = vmatprep.subr.mxu0 0.0
      %271 = vmatpush2.msra.mxu0 0.0
      %272 = vmatprep.subr.mxu0 0.0
      %273 = vmatpush2.msra.mxu0 0.0
      %274 = vmatprep.subr.mxu0 0.0
      %275 = vmatpush2.msra.mxu0 0.0
      %276 = vmatprep.subr.mxu0 0.0
      %277 = vmatpush2.msra.mxu0 0.0
      %278 = vmatprep.subr.mxu0 0.0
      %279 = vmatpush2.msra.mxu0 0.0
      %280 = vmatprep.subr.mxu0 0.0
      %281 = vmatpush2.msra.mxu0 0.0
      %282 = vmatprep.subr.mxu0 0.0
      %283 = vmatpush2.msra.mxu0 0.0
      %284 = vmatprep.subr.mxu0 0.0
      %285 = vmatpush2.msra.mxu0 0.0
      %286 = vmatprep.subr.mxu0 0.0
      %287 = vmatpush2.msra.mxu0 0.0
      %288 = vmatprep.subr.mxu0 0.0
      %289 = vmatpush2.msra.mxu0 0.0
      %290 = vmatprep.subr.mxu0 0.0
      %291 = vmatpush2.msra.mxu0 0.0
      %292 = vmatprep.subr.mxu0 0.0
      %293 = vmatpush2.msra.mxu0 0.0
      %294 = vmatprep.subr.mxu0 0.0
      %295 = vmatpush2.msra.mxu0 0.0
      %296 = vmatprep.subr.mxu0 0.0
      %297 = vmatpush2.msra.mxu0 0.0
      %298 = vmatprep.subr.mxu0 0.0
      %299 = vmatpush2.msra.mxu0 0.0
      %300 = vmatprep.subr.mxu0 0.0
      %301 = vmatpush2.msra.mxu0 0.0
      %302 = vmatprep.mubr.f32.mxu0 0.0
      %303 = vmatmul.mubr.f32.gmra.mxu0 %v232
      %v304 = vpop.f32.mrf.mxu0
      %v305 = vadd.f32 %v228, %v304
      %v306 = vpop.f32.mrf.mxu0
      %307 = vdwg.mxu0
      %v308 = vmax.f32 %v305, 0.0
      %v309 = vld [vmem:[%s3] sm:$0xff]
      %v310 = vld [vmem:[%s3 + $0x8] sm:$0xff]
      %v311 = vld [vmem:[%s3 + $0x10] sm:$0xff]
      %v312 = vld [vmem:[%s3 + $0x18] sm:$0xff]
      %v313 = vld [vmem:[%s3 + $0x20] sm:$0xff]
      %v314 = vld [vmem:[%s3 + $0x28] sm:$0xff]
      %v315 = vld [vmem:[%s3 + $0x30] sm:$0x3]
      %v316 = vld [vmem:[%s4] sm:$0x1]
      %v318 = vlaneseq
      %v319 = vshrl.u32 %v318, 7
      %v320 = vsub.s32 0, %v319
      %v321 = vrot.slane %v316, %v320
      %vm323 = vcmask 408576
      %v325 = vsel %vm323, %v308, 0
      %v328 = vsel %vm234, %v315, 0
      %330 = vmatprep.subr.mxu0 0.0
      %331 = vmatpush1.msra.mxu0 0.0
      %332 = vmatprep.subr.mxu0 0.0
      %333 = vmatpush1.msra.mxu0 0.0
      %334 = vmatprep.subr.mxu0 0.0
      %335 = vmatpush1.msra.mxu0 0.0
      %336 = vmatprep.subr.mxu0 0.0
      %337 = vmatpush1.msra.mxu0 0.0
      %338 = vmatprep.subr.mxu0 0.0
      %339 = vmatpush1.msra.mxu0 0.0
      %340 = vmatprep.subr.mxu0 0.0
      %341 = vmatpush1.msra.mxu0 0.0
      %342 = vmatprep.subr.mxu0 0.0
      %343 = vmatpush1.msra.mxu0 0.0
      %344 = vmatprep.subr.mxu0 0.0
      %345 = vmatpush1.msra.mxu0 0.0
      %346 = vmatprep.subr.mxu0 0.0
      %347 = vmatpush1.msra.mxu0 0.0
      %348 = vmatprep.subr.mxu0 0.0
      %349 = vmatpush1.msra.mxu0 %v328
      %350 = vmatprep.subr.mxu0 0.0
      %351 = vmatpush1.msra.mxu0 %v314
      %352 = vmatprep.subr.mxu0 0.0
      %353 = vmatpush1.msra.mxu0 %v313
      %354 = vmatprep.subr.mxu0 0.0
      %355 = vmatpush1.msra.mxu0 %v312
      %356 = vmatprep.subr.mxu0 0.0
      %357 = vmatpush1.msra.mxu0 %v311
      %358 = vmatprep.subr.mxu0 0.0
      %359 = vmatpush1.msra.mxu0 %v310
      %360 = vmatprep.subr.mxu0 0.0
      %361 = vmatpush1.msra.mxu0 %v309
      %362 = vmatprep.subr.mxu0 0.0
      %363 = vmatpush2.msra.mxu0 0.0
      %364 = vmatprep.subr.mxu0 0.0
      %365 = vmatpush2.msra.mxu0 0.0
      %366 = vmatprep.subr.mxu0 0.0
      %367 = vmatpush2.msra.mxu0 0.0
      %368 = vmatprep.subr.mxu0 0.0
      %369 = vmatpush2.msra.mxu0 0.0
      %370 = vmatprep.subr.mxu0 0.0
      %371 = vmatpush2.msra.mxu0 0.0
      %372 = vmatprep.subr.mxu0 0.0
      %373 = vmatpush2.msra.mxu0 0.0
      %374 = vmatprep.subr.mxu0 0.0
      %375 = vmatpush2.msra.mxu0 0.0
      %376 = vmatprep.subr.mxu0 0.0
      %377 = vmatpush2.msra.mxu0 0.0
      %378 = vmatprep.subr.mxu0 0.0
      %379 = vmatpush2.msra.mxu0 0.0
      %380 = vmatprep.subr.mxu0 0.0
      %381 = vmatpush2.msra.mxu0 0.0
      %382 = vmatprep.subr.mxu0 0.0
      %383 = vmatpush2.msra.mxu0 0.0
      %384 = vmatprep.subr.mxu0 0.0
      %385 = vmatpush2.msra.mxu0 0.0
      %386 = vmatprep.subr.mxu0 0.0
      %387 = vmatpush2.msra.mxu0 0.0
      %388 = vmatprep.subr.mxu0 0.0
      %389 = vmatpush2.msra.mxu0 0.0
      %390 = vmatprep.subr.mxu0 0.0
      %391 = vmatpush2.msra.mxu0 0.0
      %392 = vmatprep.subr.mxu0 0.0
      %393 = vmatpush2.msra.mxu0 0.0
      %394 = vmatprep.mubr.f32.mxu0 0.0
      %395 = vmatmul.mubr.f32.gmra.mxu0 %v325
      %v396 = vpop.f32.mrf.mxu0
      %v397 = vadd.f32 %v321, %v396
      %v398 = vpop.f32.mrf.mxu0
      %399 = vdwg.mxu0
      %vm400 = vcmask 15360
      %401 = vst.msk [vmem:[%s219] sm:$0xff] %vm400, %v397
      %p402 = scmp.lt.s32.totalorder %s16, 1
      %s403 = scalar_select %p402, %s16, 1
      %s404 = smul.addr %s403, 8
      %s405 = scalar_lea.vmem %s5, %s404
      // Predicated region
      $region41: #{simple_model_forward.1} parent=39 // pred_check
        %p406 = pneg %p144
      $region42: #{simple_model_forward.1} parent=39 // pred_check_branch
        %408 = sbr.rel (%p406) target = $region44
      $region43: #{simple_model_forward.1} parent=39 // pred_region
        _
      $region44: #{simple_model_forward.1} parent=39 // pred_fallthru
        _
    $region40: #{simple_model_forward.1} parent=5 // pred_fallthru
      _
    %p409 = scmp.le.s32.totalorder 2, %s11
    // Predicated region
    $region45: #{simple_model_forward.1} parent=5 // pred_check
      %p410 = pneg %p409
    $region46: #{simple_model_forward.1} parent=5 // pred_check_branch
      %412 = sbr.rel (%p410) target = $region48
    $region47: #{simple_model_forward.1} parent=5 // pred_region
      %s413 = ssub.s32 %s11, 2
      // Predicated region
      $region49: #{simple_model_forward.1} parent=47 // pred_check
        %p414 = pneg %p150
      $region50: #{simple_model_forward.1} parent=47 // pred_check_branch
        %416 = sbr.rel (%p414) target = $region52
      $region51: #{simple_model_forward.1} parent=47 // pred_region
        %p417 = scmp.lt.s32.totalorder %s17, 1
        %s418 = scalar_select %p417, %s17, 1
        %s419 = smul.addr %s418, 8
        %s420 = scalar_lea.vmem %s5, %s419
      $region52: #{simple_model_forward.1} parent=47 // pred_fallthru
        _
    $region48: #{simple_model_forward.1} parent=5 // pred_fallthru
      _
  $region6: #{simple_model_forward.1} parent=0 // loop_footer
    %s15 = sadd.s32 1, %s11
  $region7: #{simple_model_forward.1} parent=0 // loop_footer_branch
    %10 = sbr.rel target = $region3
  $region8: #{simple_model_forward.1} parent=0 // loop_exit
    _

</llo_original>
